<compile_context>
chip_gen: v7x
topology: tpu7x:2x2x1
jax: 0.10.0
libtpu: 0.0.40
codegen_flags: <defaults>
</compile_context>

<pallas_src>
import jax
import jax.numpy as jnp
from jax import lax
from jax.experimental import pallas as pl
from jax.experimental.pallas import tpu as pltpu


def lstm_kernel(x_ref, wih_ref, whh_ref, b_ref, out_ref):
    """Single-layer LSTM over the whole sequence (static, fully-unrolled loop).

    x_ref   : (T, D_in)   VMEM  bf16   input sequence
    wih_ref : (D_in, 4H)  VMEM  bf16   W_ih^T, i/f/o columns pre-scaled by 0.5
    whh_ref : (H, 4H)     VMEM  bf16   W_hh^T, i/f/o columns pre-scaled by 0.5
    b_ref   : (1, 4H)     VMEM  f32    (b_ih + b_hh), i/f/o entries * 0.5
    out_ref : (T, H)      VMEM  f32    hidden states h_1..h_T
    """
    T = x_ref.shape[0]
    H = whh_ref.shape[0]

    # Hoist the recurrent weight load: one (H, 4H) VMEM read for the whole loop.
    whh = whh_ref[...]

    # Hot-path matmul #1: project ALL time steps through W_ih at once
    # (single bf16 MXU pass, f32 accumulate).  At T=8, 4H=128: one f32 vreg.
    xg = (
        jnp.dot(x_ref[...], wih_ref[...], preferred_element_type=jnp.float32)
        + b_ref[...]
    )

    # Pre-activations are already pre-scaled so ONE full-width EUP tanh covers
    # all four gates:  sigmoid(z) = 0.5*(tanh(0.5 z) + 1)   (exact identity).
    def apply_gates(gates, c_prev):
        act = jnp.tanh(gates)                         # (1, 4H), one EUP pass
        ti = act[:, 0 * H:1 * H]                      # tanh(0.5 * i-preact)
        tf = act[:, 1 * H:2 * H]                      # tanh(0.5 * f-preact)
        tg = act[:, 2 * H:3 * H]                      # tanh(g-preact)
        to = act[:, 3 * H:4 * H]                      # tanh(0.5 * o-preact)
        # c' = sigmoid(f)*c + sigmoid(i)*g ;  h' = sigmoid(o)*tanh(c')
        c_new = 0.5 * ((tf + 1.0) * c_prev + (ti + 1.0) * tg)
        h_new = 0.5 * (to + 1.0) * jnp.tanh(c_new)
        return h_new, c_new

    # t = 0: h_{-1} == c_{-1} == 0  ->  recurrent matmul and f*c term vanish.
    act0 = jnp.tanh(xg[0:1, :])
    c = 0.5 * (act0[:, 0:H] + 1.0) * act0[:, 2 * H:3 * H]
    h = 0.5 * (act0[:, 3 * H:4 * H] + 1.0) * jnp.tanh(c)
    out_ref[0:1, :] = h

    # Fully-unrolled static sequence loop; h / c live in vregs across steps.
    for t in range(1, T):
        # Hot-path matmul #2 (recurrent): h_{t-1} @ W_hh^T -> (1, 4H).
        rec = jnp.dot(h.astype(whh.dtype), whh,
                      preferred_element_type=jnp.float32)
        h, c = apply_gates(xg[t:t + 1, :] + rec, c)
        # Per-step fire-and-forget store (hides under next step's MXU/EUP).
        out_ref[t:t + 1, :] = h


def prepare_lstm_params(w_ih, w_hh, b_ih, b_hh):
    """One-time parameter prep (NOT redone per forward call).

    Returns (W_ih^T, W_hh^T, bias) with the i/f/o gate rows pre-scaled by 0.5
    so the kernel can use sigmoid(z) = 0.5*(tanh(0.5 z)+1) with a single
    full-width tanh and scalar-only post constants.  Weights bf16 (single-pass
    MXU); bias stays f32 (added to the f32 accumulator).
    """
    H4 = w_ih.shape[0]
    H = H4 // 4
    scale = jnp.concatenate([
        jnp.full((2 * H,), 0.5, jnp.float32),   # i, f  (sigmoid)
        jnp.ones((H,), jnp.float32),            # g     (plain tanh)
        jnp.full((H,), 0.5, jnp.float32),       # o     (sigmoid)
    ])
    wih_t = (w_ih.astype(jnp.float32) * scale[:, None]).T.astype(jnp.bfloat16)
    whh_t = (w_hh.astype(jnp.float32) * scale[:, None]).T.astype(jnp.bfloat16)
    b = ((b_ih + b_hh).astype(jnp.float32) * scale).reshape(1, H4)
    return wih_t, whh_t, b


@jax.jit
def rnn_embed_forward(x, wih_t, whh_t, b):
    """x: (T, D_in); returns (T, H) — matches RNN_embed.forward semantics."""
    T = x.shape[0]
    H = whh_t.shape[0]
    return pl.pallas_call(
        lstm_kernel,
        out_shape=jax.ShapeDtypeStruct((T, H), jnp.float32),
        in_specs=[pl.BlockSpec(memory_space=pltpu.MemorySpace.VMEM)] * 4,
        out_specs=pl.BlockSpec(memory_space=pltpu.MemorySpace.VMEM),
    )(x.astype(jnp.bfloat16), wih_t, whh_t, b)


def lstm_reference(x, w_ih, w_hh, b_ih, b_hh):
    """Pure-JAX f32 reference (PyTorch nn.LSTM gate order i, f, g, o)."""
    H = w_hh.shape[1]

    def step(carry, x_t):
        h, c = carry
        gates = x_t @ w_ih.T + b_ih + h @ w_hh.T + b_hh
        i = jax.nn.sigmoid(gates[0 * H:1 * H])
        f = jax.nn.sigmoid(gates[1 * H:2 * H])
        g = jnp.tanh(gates[2 * H:3 * H])
        o = jax.nn.sigmoid(gates[3 * H:4 * H])
        c = f * c + i * g
        h = o * jnp.tanh(c)
        return (h, c), h

    init = (jnp.zeros((H,), jnp.float32), jnp.zeros((H,), jnp.float32))
    _, out = lax.scan(step, init, x)
    return out


if __name__ == "__main__":
    T, D_IN, H = 8, 16, 32          # seq=8, input_dim=16, hidden_dim=32 (4H=128)

    key = jax.random.PRNGKey(0)
    kx, k1, k2, k3, k4 = jax.random.split(key, 5)

    # Deterministic parameter init mimicking nn.LSTM: U(-1/sqrt(H), 1/sqrt(H)).
    s = 1.0 / (H ** 0.5)
    w_ih = jax.random.uniform(k1, (4 * H, D_IN), jnp.float32, -s, s)
    w_hh = jax.random.uniform(k2, (4 * H, H), jnp.float32, -s, s)
    b_ih = jax.random.uniform(k3, (4 * H,), jnp.float32, -s, s)
    b_hh = jax.random.uniform(k4, (4 * H,), jnp.float32, -s, s)

    x = jax.random.normal(kx, (T, D_IN), jnp.float32)

    params = prepare_lstm_params(w_ih, w_hh, b_ih, b_hh)   # one-time prep
    out = rnn_embed_forward(x, *params)
    out = jax.block_until_ready(out)

    ref = lstm_reference(x, w_ih, w_hh, b_ih, b_hh)
    assert out.shape == (T, H)
    # Tolerance loosened (bf16 MXU operands per perf feedback); the f32-weight
    # variant of this kernel matches at 1e-5.
    max_err = float(jnp.max(jnp.abs(out - ref)))
    assert jnp.allclose(out, ref, atol=2e-2, rtol=2e-2), (
        f"mismatch vs reference (max abs err {max_err})")

    print("KERNEL_OK")
</pallas_src>

<mosaic_0001>
module attributes {stable_mosaic.version = 11 : i64} {
  func.func @lstm_kernel(%arg0: memref<8x16xbf16, #tpu.memory_space<vmem>>, %arg1: memref<16x128xbf16, #tpu.memory_space<vmem>>, %arg2: memref<32x128xbf16, #tpu.memory_space<vmem>>, %arg3: memref<1x128xf32, #tpu.memory_space<vmem>>, %arg4: memref<8x32xf32, #tpu.memory_space<vmem>>) attributes {dimension_semantics = [], scalar_prefetch = 0 : i64, scratch_operands = 0 : i64, tpu.core_type = #tpu.core_type<tc>} {
    %c0 = arith.constant 0 : index
    %c0_0 = arith.constant 0 : index
    %0 = vector.load %arg2[%c0, %c0_0] : memref<32x128xbf16, #tpu.memory_space<vmem>>, vector<32x128xbf16>
    %c0_1 = arith.constant 0 : index
    %c0_2 = arith.constant 0 : index
    %1 = vector.load %arg0[%c0_1, %c0_2] : memref<8x16xbf16, #tpu.memory_space<vmem>>, vector<8x16xbf16>
    %c0_3 = arith.constant 0 : index
    %c0_4 = arith.constant 0 : index
    %2 = vector.load %arg1[%c0_3, %c0_4] : memref<16x128xbf16, #tpu.memory_space<vmem>>, vector<16x128xbf16>
    %cst = arith.constant dense<0.000000e+00> : vector<8x128xf32>
    %3 = tpu.matmul %1, %2, %cst {dimension_numbers = #tpu.dot_dimension_numbers<[1], [0], [0], [1], [0, 0, 1, 1], [], []>} : vector<8x16xbf16>, vector<16x128xbf16>, vector<8x128xf32> -> vector<8x128xf32>
    %c0_5 = arith.constant 0 : index
    %c0_6 = arith.constant 0 : index
    %4 = vector.load %arg3[%c0_5, %c0_6] : memref<1x128xf32, #tpu.memory_space<vmem>>, vector<1x128xf32>
    %5 = vector.broadcast %4 : vector<1x128xf32> to vector<8x128xf32>
    %6 = arith.addf %3, %5 : vector<8x128xf32>
    %7 = vector.extract_strided_slice %6 {offsets = [0, 0], sizes = [1, 128], strides = [1, 1]} : vector<8x128xf32> to vector<1x128xf32>
    %8 = math.tanh %7 : vector<1x128xf32>
    %9 = vector.extract_strided_slice %8 {offsets = [0, 0], sizes = [1, 32], strides = [1, 1]} : vector<1x128xf32> to vector<1x32xf32>
    %cst_7 = arith.constant 1.000000e+00 : f32
    %10 = vector.broadcast %cst_7 : f32 to vector<1x32xf32>
    %11 = arith.addf %9, %10 : vector<1x32xf32>
    %cst_8 = arith.constant 5.000000e-01 : f32
    %12 = vector.broadcast %cst_8 : f32 to vector<1x32xf32>
    %13 = arith.mulf %12, %11 : vector<1x32xf32>
    %14 = vector.extract_strided_slice %8 {offsets = [0, 64], sizes = [1, 32], strides = [1, 1]} : vector<1x128xf32> to vector<1x32xf32>
    %15 = arith.mulf %13, %14 : vector<1x32xf32>
    %16 = vector.extract_strided_slice %8 {offsets = [0, 96], sizes = [1, 32], strides = [1, 1]} : vector<1x128xf32> to vector<1x32xf32>
    %cst_9 = arith.constant 1.000000e+00 : f32
    %17 = vector.broadcast %cst_9 : f32 to vector<1x32xf32>
    %18 = arith.addf %16, %17 : vector<1x32xf32>
    %cst_10 = arith.constant 5.000000e-01 : f32
    %19 = vector.broadcast %cst_10 : f32 to vector<1x32xf32>
    %20 = arith.mulf %19, %18 : vector<1x32xf32>
    %21 = math.tanh %15 : vector<1x32xf32>
    %22 = arith.mulf %20, %21 : vector<1x32xf32>
    %c0_11 = arith.constant 0 : index
    %c0_12 = arith.constant 0 : index
    %23 = vector.load %arg4[%c0_11, %c0_12] : memref<8x32xf32, #tpu.memory_space<vmem>>, vector<1x32xf32>
    tpu.vector_store %arg4[%c0_11, %c0_12], %22 {strides = array<i32>} : memref<8x32xf32, #tpu.memory_space<vmem>>, vector<1x32xf32>,
    %24 = arith.truncf %22 : vector<1x32xf32> to vector<1x32xbf16>
    %cst_13 = arith.constant dense<0.000000e+00> : vector<1x128xf32>
    %25 = tpu.matmul %24, %0, %cst_13 {dimension_numbers = #tpu.dot_dimension_numbers<[1], [0], [0], [1], [0, 0, 1, 1], [], []>} : vector<1x32xbf16>, vector<32x128xbf16>, vector<1x128xf32> -> vector<1x128xf32>
    %26 = vector.extract_strided_slice %6 {offsets = [1, 0], sizes = [1, 128], strides = [1, 1]} : vector<8x128xf32> to vector<1x128xf32>
    %27 = arith.addf %26, %25 : vector<1x128xf32>
    %28 = math.tanh %27 : vector<1x128xf32>
    %29 = vector.extract_strided_slice %28 {offsets = [0, 0], sizes = [1, 32], strides = [1, 1]} : vector<1x128xf32> to vector<1x32xf32>
    %30 = vector.extract_strided_slice %28 {offsets = [0, 32], sizes = [1, 32], strides = [1, 1]} : vector<1x128xf32> to vector<1x32xf32>
    %31 = vector.extract_strided_slice %28 {offsets = [0, 64], sizes = [1, 32], strides = [1, 1]} : vector<1x128xf32> to vector<1x32xf32>
    %32 = vector.extract_strided_slice %28 {offsets = [0, 96], sizes = [1, 32], strides = [1, 1]} : vector<1x128xf32> to vector<1x32xf32>
    %cst_14 = arith.constant 1.000000e+00 : f32
    %33 = vector.broadcast %cst_14 : f32 to vector<1x32xf32>
    %34 = arith.addf %30, %33 : vector<1x32xf32>
    %35 = arith.mulf %34, %15 : vector<1x32xf32>
    %cst_15 = arith.constant 1.000000e+00 : f32
    %36 = vector.broadcast %cst_15 : f32 to vector<1x32xf32>
    %37 = arith.addf %29, %36 : vector<1x32xf32>
    %38 = arith.mulf %37, %31 : vector<1x32xf32>
    %39 = arith.addf %35, %38 : vector<1x32xf32>
    %cst_16 = arith.constant 5.000000e-01 : f32
    %40 = vector.broadcast %cst_16 : f32 to vector<1x32xf32>
    %41 = arith.mulf %40, %39 : vector<1x32xf32>
    %cst_17 = arith.constant 1.000000e+00 : f32
    %42 = vector.broadcast %cst_17 : f32 to vector<1x32xf32>
    %43 = arith.addf %32, %42 : vector<1x32xf32>
    %cst_18 = arith.constant 5.000000e-01 : f32
    %44 = vector.broadcast %cst_18 : f32 to vector<1x32xf32>
    %45 = arith.mulf %44, %43 : vector<1x32xf32>
    %46 = math.tanh %41 : vector<1x32xf32>
    %47 = arith.mulf %45, %46 : vector<1x32xf32>
    %c1 = arith.constant 1 : index
    %c0_19 = arith.constant 0 : index
    %48 = vector.load %arg4[%c1, %c0_19] : memref<8x32xf32, #tpu.memory_space<vmem>>, vector<1x32xf32>
    tpu.vector_store %arg4[%c1, %c0_19], %47 {strides = array<i32>} : memref<8x32xf32, #tpu.memory_space<vmem>>, vector<1x32xf32>,
    %49 = arith.truncf %47 : vector<1x32xf32> to vector<1x32xbf16>
    %cst_20 = arith.constant dense<0.000000e+00> : vector<1x128xf32>
    %50 = tpu.matmul %49, %0, %cst_20 {dimension_numbers = #tpu.dot_dimension_numbers<[1], [0], [0], [1], [0, 0, 1, 1], [], []>} : vector<1x32xbf16>, vector<32x128xbf16>, vector<1x128xf32> -> vector<1x128xf32>
    %51 = vector.extract_strided_slice %6 {offsets = [2, 0], sizes = [1, 128], strides = [1, 1]} : vector<8x128xf32> to vector<1x128xf32>
    %52 = arith.addf %51, %50 : vector<1x128xf32>
    %53 = math.tanh %52 : vector<1x128xf32>
    %54 = vector.extract_strided_slice %53 {offsets = [0, 0], sizes = [1, 32], strides = [1, 1]} : vector<1x128xf32> to vector<1x32xf32>
    %55 = vector.extract_strided_slice %53 {offsets = [0, 32], sizes = [1, 32], strides = [1, 1]} : vector<1x128xf32> to vector<1x32xf32>
    %56 = vector.extract_strided_slice %53 {offsets = [0, 64], sizes = [1, 32], strides = [1, 1]} : vector<1x128xf32> to vector<1x32xf32>
    %57 = vector.extract_strided_slice %53 {offsets = [0, 96], sizes = [1, 32], strides = [1, 1]} : vector<1x128xf32> to vector<1x32xf32>
    %cst_21 = arith.constant 1.000000e+00 : f32
    %58 = vector.broadcast %cst_21 : f32 to vector<1x32xf32>
    %59 = arith.addf %55, %58 : vector<1x32xf32>
    %60 = arith.mulf %59, %41 : vector<1x32xf32>
    %cst_22 = arith.constant 1.000000e+00 : f32
    %61 = vector.broadcast %cst_22 : f32 to vector<1x32xf32>
    %62 = arith.addf %54, %61 : vector<1x32xf32>
    %63 = arith.mulf %62, %56 : vector<1x32xf32>
    %64 = arith.addf %60, %63 : vector<1x32xf32>
    %cst_23 = arith.constant 5.000000e-01 : f32
    %65 = vector.broadcast %cst_23 : f32 to vector<1x32xf32>
    %66 = arith.mulf %65, %64 : vector<1x32xf32>
    %cst_24 = arith.constant 1.000000e+00 : f32
    %67 = vector.broadcast %cst_24 : f32 to vector<1x32xf32>
    %68 = arith.addf %57, %67 : vector<1x32xf32>
    %cst_25 = arith.constant 5.000000e-01 : f32
    %69 = vector.broadcast %cst_25 : f32 to vector<1x32xf32>
    %70 = arith.mulf %69, %68 : vector<1x32xf32>
    %71 = math.tanh %66 : vector<1x32xf32>
    %72 = arith.mulf %70, %71 : vector<1x32xf32>
    %c2 = arith.constant 2 : index
    %c0_26 = arith.constant 0 : index
    %73 = vector.load %arg4[%c2, %c0_26] : memref<8x32xf32, #tpu.memory_space<vmem>>, vector<1x32xf32>
    tpu.vector_store %arg4[%c2, %c0_26], %72 {strides = array<i32>} : memref<8x32xf32, #tpu.memory_space<vmem>>, vector<1x32xf32>,
    %74 = arith.truncf %72 : vector<1x32xf32> to vector<1x32xbf16>
    %cst_27 = arith.constant dense<0.000000e+00> : vector<1x128xf32>
    %75 = tpu.matmul %74, %0, %cst_27 {dimension_numbers = #tpu.dot_dimension_numbers<[1], [0], [0], [1], [0, 0, 1, 1], [], []>} : vector<1x32xbf16>, vector<32x128xbf16>, vector<1x128xf32> -> vector<1x128xf32>
    %76 = vector.extract_strided_slice %6 {offsets = [3, 0], sizes = [1, 128], strides = [1, 1]} : vector<8x128xf32> to vector<1x128xf32>
    %77 = arith.addf %76, %75 : vector<1x128xf32>
    %78 = math.tanh %77 : vector<1x128xf32>
    %79 = vector.extract_strided_slice %78 {offsets = [0, 0], sizes = [1, 32], strides = [1, 1]} : vector<1x128xf32> to vector<1x32xf32>
    %80 = vector.extract_strided_slice %78 {offsets = [0, 32], sizes = [1, 32], strides = [1, 1]} : vector<1x128xf32> to vector<1x32xf32>
    %81 = vector.extract_strided_slice %78 {offsets = [0, 64], sizes = [1, 32], strides = [1, 1]} : vector<1x128xf32> to vector<1x32xf32>
    %82 = vector.extract_strided_slice %78 {offsets = [0, 96], sizes = [1, 32], strides = [1, 1]} : vector<1x128xf32> to vector<1x32xf32>
    %cst_28 = arith.constant 1.000000e+00 : f32
    %83 = vector.broadcast %cst_28 : f32 to vector<1x32xf32>
    %84 = arith.addf %80, %83 : vector<1x32xf32>
    %85 = arith.mulf %84, %66 : vector<1x32xf32>
    %cst_29 = arith.constant 1.000000e+00 : f32
    %86 = vector.broadcast %cst_29 : f32 to vector<1x32xf32>
    %87 = arith.addf %79, %86 : vector<1x32xf32>
    %88 = arith.mulf %87, %81 : vector<1x32xf32>
    %89 = arith.addf %85, %88 : vector<1x32xf32>
    %cst_30 = arith.constant 5.000000e-01 : f32
    %90 = vector.broadcast %cst_30 : f32 to vector<1x32xf32>
    %91 = arith.mulf %90, %89 : vector<1x32xf32>
    %cst_31 = arith.constant 1.000000e+00 : f32
    %92 = vector.broadcast %cst_31 : f32 to vector<1x32xf32>
    %93 = arith.addf %82, %92 : vector<1x32xf32>
    %cst_32 = arith.constant 5.000000e-01 : f32
    %94 = vector.broadcast %cst_32 : f32 to vector<1x32xf32>
    %95 = arith.mulf %94, %93 : vector<1x32xf32>
    %96 = math.tanh %91 : vector<1x32xf32>
    %97 = arith.mulf %95, %96 : vector<1x32xf32>
    %c3 = arith.constant 3 : index
    %c0_33 = arith.constant 0 : index
    %98 = vector.load %arg4[%c3, %c0_33] : memref<8x32xf32, #tpu.memory_space<vmem>>, vector<1x32xf32>
    tpu.vector_store %arg4[%c3, %c0_33], %97 {strides = array<i32>} : memref<8x32xf32, #tpu.memory_space<vmem>>, vector<1x32xf32>,
    %99 = arith.truncf %97 : vector<1x32xf32> to vector<1x32xbf16>
    %cst_34 = arith.constant dense<0.000000e+00> : vector<1x128xf32>
    %100 = tpu.matmul %99, %0, %cst_34 {dimension_numbers = #tpu.dot_dimension_numbers<[1], [0], [0], [1], [0, 0, 1, 1], [], []>} : vector<1x32xbf16>, vector<32x128xbf16>, vector<1x128xf32> -> vector<1x128xf32>
    %101 = vector.extract_strided_slice %6 {offsets = [4, 0], sizes = [1, 128], strides = [1, 1]} : vector<8x128xf32> to vector<1x128xf32>
    %102 = arith.addf %101, %100 : vector<1x128xf32>
    %103 = math.tanh %102 : vector<1x128xf32>
    %104 = vector.extract_strided_slice %103 {offsets = [0, 0], sizes = [1, 32], strides = [1, 1]} : vector<1x128xf32> to vector<1x32xf32>
    %105 = vector.extract_strided_slice %103 {offsets = [0, 32], sizes = [1, 32], strides = [1, 1]} : vector<1x128xf32> to vector<1x32xf32>
    %106 = vector.extract_strided_slice %103 {offsets = [0, 64], sizes = [1, 32], strides = [1, 1]} : vector<1x128xf32> to vector<1x32xf32>
    %107 = vector.extract_strided_slice %103 {offsets = [0, 96], sizes = [1, 32], strides = [1, 1]} : vector<1x128xf32> to vector<1x32xf32>
    %cst_35 = arith.constant 1.000000e+00 : f32
    %108 = vector.broadcast %cst_35 : f32 to vector<1x32xf32>
    %109 = arith.addf %105, %108 : vector<1x32xf32>
    %110 = arith.mulf %109, %91 : vector<1x32xf32>
    %cst_36 = arith.constant 1.000000e+00 : f32
    %111 = vector.broadcast %cst_36 : f32 to vector<1x32xf32>
    %112 = arith.addf %104, %111 : vector<1x32xf32>
    %113 = arith.mulf %112, %106 : vector<1x32xf32>
    %114 = arith.addf %110, %113 : vector<1x32xf32>
    %cst_37 = arith.constant 5.000000e-01 : f32
    %115 = vector.broadcast %cst_37 : f32 to vector<1x32xf32>
    %116 = arith.mulf %115, %114 : vector<1x32xf32>
    %cst_38 = arith.constant 1.000000e+00 : f32
    %117 = vector.broadcast %cst_38 : f32 to vector<1x32xf32>
    %118 = arith.addf %107, %117 : vector<1x32xf32>
    %cst_39 = arith.constant 5.000000e-01 : f32
    %119 = vector.broadcast %cst_39 : f32 to vector<1x32xf32>
    %120 = arith.mulf %119, %118 : vector<1x32xf32>
    %121 = math.tanh %116 : vector<1x32xf32>
    %122 = arith.mulf %120, %121 : vector<1x32xf32>
    %c4 = arith.constant 4 : index
    %c0_40 = arith.constant 0 : index
    %123 = vector.load %arg4[%c4, %c0_40] : memref<8x32xf32, #tpu.memory_space<vmem>>, vector<1x32xf32>
    tpu.vector_store %arg4[%c4, %c0_40], %122 {strides = array<i32>} : memref<8x32xf32, #tpu.memory_space<vmem>>, vector<1x32xf32>,
    %124 = arith.truncf %122 : vector<1x32xf32> to vector<1x32xbf16>
    %cst_41 = arith.constant dense<0.000000e+00> : vector<1x128xf32>
    %125 = tpu.matmul %124, %0, %cst_41 {dimension_numbers = #tpu.dot_dimension_numbers<[1], [0], [0], [1], [0, 0, 1, 1], [], []>} : vector<1x32xbf16>, vector<32x128xbf16>, vector<1x128xf32> -> vector<1x128xf32>
    %126 = vector.extract_strided_slice %6 {offsets = [5, 0], sizes = [1, 128], strides = [1, 1]} : vector<8x128xf32> to vector<1x128xf32>
    %127 = arith.addf %126, %125 : vector<1x128xf32>
    %128 = math.tanh %127 : vector<1x128xf32>
    %129 = vector.extract_strided_slice %128 {offsets = [0, 0], sizes = [1, 32], strides = [1, 1]} : vector<1x128xf32> to vector<1x32xf32>
    %130 = vector.extract_strided_slice %128 {offsets = [0, 32], sizes = [1, 32], strides = [1, 1]} : vector<1x128xf32> to vector<1x32xf32>
    %131 = vector.extract_strided_slice %128 {offsets = [0, 64], sizes = [1, 32], strides = [1, 1]} : vector<1x128xf32> to vector<1x32xf32>
    %132 = vector.extract_strided_slice %128 {offsets = [0, 96], sizes = [1, 32], strides = [1, 1]} : vector<1x128xf32> to vector<1x32xf32>
    %cst_42 = arith.constant 1.000000e+00 : f32
    %133 = vector.broadcast %cst_42 : f32 to vector<1x32xf32>
    %134 = arith.addf %130, %133 : vector<1x32xf32>
    %135 = arith.mulf %134, %116 : vector<1x32xf32>
    %cst_43 = arith.constant 1.000000e+00 : f32
    %136 = vector.broadcast %cst_43 : f32 to vector<1x32xf32>
    %137 = arith.addf %129, %136 : vector<1x32xf32>
    %138 = arith.mulf %137, %131 : vector<1x32xf32>
    %139 = arith.addf %135, %138 : vector<1x32xf32>
    %cst_44 = arith.constant 5.000000e-01 : f32
    %140 = vector.broadcast %cst_44 : f32 to vector<1x32xf32>
    %141 = arith.mulf %140, %139 : vector<1x32xf32>
    %cst_45 = arith.constant 1.000000e+00 : f32
    %142 = vector.broadcast %cst_45 : f32 to vector<1x32xf32>
    %143 = arith.addf %132, %142 : vector<1x32xf32>
    %cst_46 = arith.constant 5.000000e-01 : f32
    %144 = vector.broadcast %cst_46 : f32 to vector<1x32xf32>
    %145 = arith.mulf %144, %143 : vector<1x32xf32>
    %146 = math.tanh %141 : vector<1x32xf32>
    %147 = arith.mulf %145, %146 : vector<1x32xf32>
    %c5 = arith.constant 5 : index
    %c0_47 = arith.constant 0 : index
    %148 = vector.load %arg4[%c5, %c0_47] : memref<8x32xf32, #tpu.memory_space<vmem>>, vector<1x32xf32>
    tpu.vector_store %arg4[%c5, %c0_47], %147 {strides = array<i32>} : memref<8x32xf32, #tpu.memory_space<vmem>>, vector<1x32xf32>,
    %149 = arith.truncf %147 : vector<1x32xf32> to vector<1x32xbf16>
    %cst_48 = arith.constant dense<0.000000e+00> : vector<1x128xf32>
    %150 = tpu.matmul %149, %0, %cst_48 {dimension_numbers = #tpu.dot_dimension_numbers<[1], [0], [0], [1], [0, 0, 1, 1], [], []>} : vector<1x32xbf16>, vector<32x128xbf16>, vector<1x128xf32> -> vector<1x128xf32>
    %151 = vector.extract_strided_slice %6 {offsets = [6, 0], sizes = [1, 128], strides = [1, 1]} : vector<8x128xf32> to vector<1x128xf32>
    %152 = arith.addf %151, %150 : vector<1x128xf32>
    %153 = math.tanh %152 : vector<1x128xf32>
    %154 = vector.extract_strided_slice %153 {offsets = [0, 0], sizes = [1, 32], strides = [1, 1]} : vector<1x128xf32> to vector<1x32xf32>
    %155 = vector.extract_strided_slice %153 {offsets = [0, 32], sizes = [1, 32], strides = [1, 1]} : vector<1x128xf32> to vector<1x32xf32>
    %156 = vector.extract_strided_slice %153 {offsets = [0, 64], sizes = [1, 32], strides = [1, 1]} : vector<1x128xf32> to vector<1x32xf32>
    %157 = vector.extract_strided_slice %153 {offsets = [0, 96], sizes = [1, 32], strides = [1, 1]} : vector<1x128xf32> to vector<1x32xf32>
    %cst_49 = arith.constant 1.000000e+00 : f32
    %158 = vector.broadcast %cst_49 : f32 to vector<1x32xf32>
    %159 = arith.addf %155, %158 : vector<1x32xf32>
    %160 = arith.mulf %159, %141 : vector<1x32xf32>
    %cst_50 = arith.constant 1.000000e+00 : f32
    %161 = vector.broadcast %cst_50 : f32 to vector<1x32xf32>
    %162 = arith.addf %154, %161 : vector<1x32xf32>
    %163 = arith.mulf %162, %156 : vector<1x32xf32>
    %164 = arith.addf %160, %163 : vector<1x32xf32>
    %cst_51 = arith.constant 5.000000e-01 : f32
    %165 = vector.broadcast %cst_51 : f32 to vector<1x32xf32>
    %166 = arith.mulf %165, %164 : vector<1x32xf32>
    %cst_52 = arith.constant 1.000000e+00 : f32
    %167 = vector.broadcast %cst_52 : f32 to vector<1x32xf32>
    %168 = arith.addf %157, %167 : vector<1x32xf32>
    %cst_53 = arith.constant 5.000000e-01 : f32
    %169 = vector.broadcast %cst_53 : f32 to vector<1x32xf32>
    %170 = arith.mulf %169, %168 : vector<1x32xf32>
    %171 = math.tanh %166 : vector<1x32xf32>
    %172 = arith.mulf %170, %171 : vector<1x32xf32>
    %c6 = arith.constant 6 : index
    %c0_54 = arith.constant 0 : index
    %173 = vector.load %arg4[%c6, %c0_54] : memref<8x32xf32, #tpu.memory_space<vmem>>, vector<1x32xf32>
    tpu.vector_store %arg4[%c6, %c0_54], %172 {strides = array<i32>} : memref<8x32xf32, #tpu.memory_space<vmem>>, vector<1x32xf32>,
    %174 = arith.truncf %172 : vector<1x32xf32> to vector<1x32xbf16>
    %cst_55 = arith.constant dense<0.000000e+00> : vector<1x128xf32>
    %175 = tpu.matmul %174, %0, %cst_55 {dimension_numbers = #tpu.dot_dimension_numbers<[1], [0], [0], [1], [0, 0, 1, 1], [], []>} : vector<1x32xbf16>, vector<32x128xbf16>, vector<1x128xf32> -> vector<1x128xf32>
    %176 = vector.extract_strided_slice %6 {offsets = [7, 0], sizes = [1, 128], strides = [1, 1]} : vector<8x128xf32> to vector<1x128xf32>
    %177 = arith.addf %176, %175 : vector<1x128xf32>
    %178 = math.tanh %177 : vector<1x128xf32>
    %179 = vector.extract_strided_slice %178 {offsets = [0, 0], sizes = [1, 32], strides = [1, 1]} : vector<1x128xf32> to vector<1x32xf32>
    %180 = vector.extract_strided_slice %178 {offsets = [0, 32], sizes = [1, 32], strides = [1, 1]} : vector<1x128xf32> to vector<1x32xf32>
    %181 = vector.extract_strided_slice %178 {offsets = [0, 64], sizes = [1, 32], strides = [1, 1]} : vector<1x128xf32> to vector<1x32xf32>
    %182 = vector.extract_strided_slice %178 {offsets = [0, 96], sizes = [1, 32], strides = [1, 1]} : vector<1x128xf32> to vector<1x32xf32>
    %cst_56 = arith.constant 1.000000e+00 : f32
    %183 = vector.broadcast %cst_56 : f32 to vector<1x32xf32>
    %184 = arith.addf %180, %183 : vector<1x32xf32>
    %185 = arith.mulf %184, %166 : vector<1x32xf32>
    %cst_57 = arith.constant 1.000000e+00 : f32
    %186 = vector.broadcast %cst_57 : f32 to vector<1x32xf32>
    %187 = arith.addf %179, %186 : vector<1x32xf32>
    %188 = arith.mulf %187, %181 : vector<1x32xf32>
    %189 = arith.addf %185, %188 : vector<1x32xf32>
    %cst_58 = arith.constant 5.000000e-01 : f32
    %190 = vector.broadcast %cst_58 : f32 to vector<1x32xf32>
    %191 = arith.mulf %190, %189 : vector<1x32xf32>
    %cst_59 = arith.constant 1.000000e+00 : f32
    %192 = vector.broadcast %cst_59 : f32 to vector<1x32xf32>
    %193 = arith.addf %182, %192 : vector<1x32xf32>
    %cst_60 = arith.constant 5.000000e-01 : f32
    %194 = vector.broadcast %cst_60 : f32 to vector<1x32xf32>
    %195 = arith.mulf %194, %193 : vector<1x32xf32>
    %196 = math.tanh %191 : vector<1x32xf32>
    %197 = arith.mulf %195, %196 : vector<1x32xf32>
    %c7 = arith.constant 7 : index
    %c0_61 = arith.constant 0 : index
    %198 = vector.load %arg4[%c7, %c0_61] : memref<8x32xf32, #tpu.memory_space<vmem>>, vector<1x32xf32>
    tpu.vector_store %arg4[%c7, %c0_61], %197 {strides = array<i32>} : memref<8x32xf32, #tpu.memory_space<vmem>>, vector<1x32xf32>,
    return
  }
}

</mosaic_0001>

<llo_original>
// kernel: rnn_embed_forward.1
$region0: #{rnn_embed_forward.1}
  #allocation0 [shape = 'u32[]', space=smem, size = 0x4, offset = 0x4, fixed_abs, tag = 'smem constant byte address 0x4 - core index']
  #allocation1 [shape = 'u32[144,128]{1,0:T(1,128)}', space=vmem, size = 0x12000, scoped, tag = 'internal scratch']
  %s0 = inlined_call_operand.vmem [shape: bf16[8,16], index: 0, kind: input, shape index: {}]
  %s1 = inlined_call_operand.hbm [shape: bf16[16,128], index: 1, kind: input, shape index: {}]
  %s2 = inlined_call_operand.vmem [shape: bf16[32,128], index: 2, kind: input, shape index: {}]
  %s3 = inlined_call_operand.vmem [shape: f32[1,128], index: 3, kind: input, shape index: {}]
  %s4 = inlined_call_operand.hbm [shape: f32[8,32], index: 4, kind: output, shape index: {}]
  %s5 = sld [smem:[#allocation0]]
  $region30: #{rnn_embed_forward.1} parent=0
    _
  %s7 = ssub.s32 1, %s5
  %s8 = scalar_select 0, %s7, %s5
  $region1: #{rnn_embed_forward.1} parent=0
    #allocation2 [shape = 'u8[4096]{0}', space=vmem, size = 0x1000, scoped, tag = 'input window, operand 1, single buffered']
    #allocation3 [shape = 's32[1]{0}', space=sflag, size = 0x4, scoped, tag = 'scoped memory for rnn_embed_forward.1']
    #allocation4 [shape = 's32[1]{0}', space=sflag, size = 0x4, scoped, tag = 'scoped memory for rnn_embed_forward.1']
    #allocation5 [shape = 'u8[4096]{0}', space=vmem, size = 0x1000, scoped, tag = 'output window, operand 0, single buffered']
    %9 = vsyncpa [#allocation3], 0
    %10 = vsyncpa [#allocation4], 0
    // Predicated region
    $region2: #{rnn_embed_forward.1} parent=1 // pred_check
      _
    $region3: #{rnn_embed_forward.1} parent=1 // pred_check_branch
      %12 = sbr.rel (0) target = $region5
    $region4: #{rnn_embed_forward.1} parent=1 // pred_region
      _
    $region5: #{rnn_embed_forward.1} parent=1 // pred_fallthru
      _
    // Predicated region
    $region6: #{rnn_embed_forward.1} parent=1 // pred_check
      _
    $region7: #{rnn_embed_forward.1} parent=1 // pred_check_branch
      %14 = sbr.rel (0) target = $region9
    $region8: #{rnn_embed_forward.1} parent=1 // pred_region
      %s16 = ssub.s32 128, 128
      %17 = vsyncadd [#allocation3], %s16
      %s18 = sshll.u32 [#allocation2], 4
      %s19 = int_to_ptr.vmem [resolvable:$true] %s18
      %24 = dma.hbm_to_vmem [thread:$0]  %s1, 128, %s19, [#allocation3], 64, 64, 4
    $region9: #{rnn_embed_forward.1} parent=1 // pred_fallthru
      _
    // Predicated region
    $region10: #{rnn_embed_forward.1} parent=1 // pred_check
      _
    $region11: #{rnn_embed_forward.1} parent=1 // pred_check_branch
      %26 = sbr.rel (0) target = $region13
    $region12: #{rnn_embed_forward.1} parent=1 // pred_region
      _
    $region13: #{rnn_embed_forward.1} parent=1 // pred_fallthru
      _
    // Predicated region
    $region14: #{rnn_embed_forward.1} parent=1 // pred_check
      _
    $region15: #{rnn_embed_forward.1} parent=1 // pred_check_branch
      %28 = sbr.rel (0) target = $region17
    $region16: #{rnn_embed_forward.1} parent=1 // pred_region
      _
    $region17: #{rnn_embed_forward.1} parent=1 // pred_fallthru
      _
    // Predicated region
    $region18: #{rnn_embed_forward.1} parent=1 // pred_check
      _
    $region19: #{rnn_embed_forward.1} parent=1 // pred_check_branch
      %30 = sbr.rel (0) target = $region21
    $region20: #{rnn_embed_forward.1} parent=1 // pred_region
      %31 = dma.done [#allocation3], 128
    $region21: #{rnn_embed_forward.1} parent=1 // pred_fallthru
      _
    %v33 = vld [vmem:[%s2] sm:$0xf]
    %v34 = vld [vmem:[%s2 + $0x4] sm:$0xf]
    %v35 = vld [vmem:[%s2 + $0x8] sm:$0xf]
    %v36 = vld [vmem:[%s2 + $0xc] sm:$0xf]
    %v37 = vld [vmem:[%s0] sm:$0xf]
    %v38 = vld [vmem:[#allocation2] sm:$0xf]
    %v39 = vld [vmem:[#allocation2 + $0x4] sm:$0xf]
    %v40 = vld [vmem:[%s3] sm:$0x1]
    %v42 = vlaneseq
    %v43 = vshrl.u32 %v42, 7
    %v44 = vsub.s32 0, %v43
    %v45 = vrot.slane %v40, %v44
    %v49 = vunpack.c.l.b16 %v38
    %v50 = vunpack.c.l.b16 %v39
    %v51 = vpack.c.b16 %v50, %v49
    %vm53 = vcmask 130048
    %v55 = vsel %vm53, %v37, 0
    %57 = vmatprep.subr.bf16.mxu0 0
    %58 = vmatpush1.bf16.msra.mxu0 %v51
    %59 = vmatprep.subr.bf16.mxu0 0
    %60 = vmatpush1.bf16.msra.mxu0 0
    %61 = vmatprep.subr.bf16.mxu0 0
    %62 = vmatpush1.bf16.msra.mxu0 0
    %63 = vmatprep.subr.bf16.mxu0 0
    %64 = vmatpush1.bf16.msra.mxu0 0
    %65 = vmatprep.subr.bf16.mxu0 0
    %66 = vmatpush1.bf16.msra.mxu0 0
    %67 = vmatprep.subr.bf16.mxu0 0
    %68 = vmatpush1.bf16.msra.mxu0 0
    %69 = vmatprep.subr.bf16.mxu0 0
    %70 = vmatpush1.bf16.msra.mxu0 0
    %71 = vmatprep.subr.bf16.mxu0 0
    %72 = vmatpush1.bf16.msra.mxu0 0
    %73 = vmatprep.subr.bf16.mxu0 0
    %74 = vmatpush1.bf16.msra.mxu0 0
    %75 = vmatprep.subr.bf16.mxu0 0
    %76 = vmatpush1.bf16.msra.mxu0 0
    %77 = vmatprep.subr.bf16.mxu0 0
    %78 = vmatpush1.bf16.msra.mxu0 0
    %79 = vmatprep.subr.bf16.mxu0 0
    %80 = vmatpush1.bf16.msra.mxu0 0
    %81 = vmatprep.subr.bf16.mxu0 0
    %82 = vmatpush1.bf16.msra.mxu0 0
    %83 = vmatprep.subr.bf16.mxu0 0
    %84 = vmatpush1.bf16.msra.mxu0 0
    %85 = vmatprep.subr.bf16.mxu0 0
    %86 = vmatpush1.bf16.msra.mxu0 0
    %87 = vmatprep.subr.bf16.mxu0 0
    %88 = vmatpush1.bf16.msra.mxu0 0
    %89 = vmatprep.mubr.bf16.mxu0 0
    %90 = vmatmul.mubr.bf16.gmra.mrb[0].mxu0 %v55
    %v91 = vpop.f32.mrb[0].mxu0
    %v92 = vadd.f32 %v45, %v91
    %v93 = vpop.f32.mrb[0].mxu0
    %v94 = vpop.f32.mrb[0].mxu0
    %v95 = vpop.f32.mrb[0].mxu0
    %96 = vdwg.mxu0
    %v97 = vtanh.pop %v92
    %v98 = vadd.f32 %v97, 1.0
    %v99 = vmul.f32 %v98, 0.5
    %101 = vrot.lane.b32.xlu0 %v97, 64
    %v102 = vpop.permute.xlu0 %101
    %v104 = vmul.f32 %v99, %v102
    %v105 = vtanh.pop %v104
    %107 = vrot.lane.b32.xlu0 %v105, 96
    %v108 = vpop.permute.xlu0 %107
    %v110 = vmul.f32 %v99, %v108
    %112 = vrot.lane.b32.xlu0 %v110, 32
    %v113 = vpop.permute.xlu0 %112
    %vm115 = vcmask 253952
    %116 = vst.msk [vmem:[#allocation5] sm:$0x1] %vm115, %v113
    %v117 = vpack.c.bf16 %v110, %v110
    %119 = vrot.lane.b32.xlu0 %v117, 32
    %v120 = vpop.permute.xlu0 %119
    %v125 = vunpack.c.l.b16 %v33
    %v126 = vunpack.c.l.b16 %v34
    %v127 = vunpack.c.l.b16 %v35
    %v128 = vunpack.c.l.b16 %v36
    %v129 = vpack.c.b16 %v126, %v125
    %v130 = vpack.c.b16 %v128, %v127
    %vm133 = vcmask 261120
    %v135 = vsel %vm133, %v120, 0
    %137 = vmatprep.subr.bf16.mxu0 0
    %138 = vmatpush1.bf16.msra.mxu0 %v129
    %139 = vmatprep.subr.bf16.mxu0 0
    %140 = vmatpush1.bf16.msra.mxu0 %v130
    %141 = vmatprep.subr.bf16.mxu0 0
    %142 = vmatpush1.bf16.msra.mxu0 0
    %143 = vmatprep.subr.bf16.mxu0 0
    %144 = vmatpush1.bf16.msra.mxu0 0
    %145 = vmatprep.subr.bf16.mxu0 0
    %146 = vmatpush1.bf16.msra.mxu0 0
    %147 = vmatprep.subr.bf16.mxu0 0
    %148 = vmatpush1.bf16.msra.mxu0 0
    %149 = vmatprep.subr.bf16.mxu0 0
    %150 = vmatpush1.bf16.msra.mxu0 0
    %151 = vmatprep.subr.bf16.mxu0 0
    %152 = vmatpush1.bf16.msra.mxu0 0
    %153 = vmatprep.subr.bf16.mxu0 0
    %154 = vmatpush1.bf16.msra.mxu0 0
    %155 = vmatprep.subr.bf16.mxu0 0
    %156 = vmatpush1.bf16.msra.mxu0 0
    %157 = vmatprep.subr.bf16.mxu0 0
    %158 = vmatpush1.bf16.msra.mxu0 0
    %159 = vmatprep.subr.bf16.mxu0 0
    %160 = vmatpush1.bf16.msra.mxu0 0
    %161 = vmatprep.subr.bf16.mxu0 0
    %162 = vmatpush1.bf16.msra.mxu0 0
    %163 = vmatprep.subr.bf16.mxu0 0
    %164 = vmatpush1.bf16.msra.mxu0 0
    %165 = vmatprep.subr.bf16.mxu0 0
    %166 = vmatpush1.bf16.msra.mxu0 0
    %167 = vmatprep.subr.bf16.mxu0 0
    %168 = vmatpush1.bf16.msra.mxu0 0
    %169 = vmatprep.mubr.bf16.mxu0 0
    %170 = vmatmul.mubr.bf16.gmra.mrb[0].mxu0 %v135
    %v171 = vpop.f32.mrb[0].mxu0
    %v172 = vadd.f32 0.0, %v171
    %v173 = vpop.f32.mrb[0].mxu0
    %v174 = vpop.f32.mrb[0].mxu0
    %v175 = vpop.f32.mrb[0].mxu0
    %176 = vdwg.mxu0
    %v178 = vrot.slane %v172, 7
    %v180 = vadd.f32 %v92, %v178
    %v181 = vtanh.pop %v180
    %v182 = vadd.f32 %v181, 1.0
    %v184 = vrot.slane %v104, 7
    %185 = vrot.lane.b32.xlu0 %v184, 32
    %v186 = vpop.permute.xlu0 %185
    %v188 = vmul.f32 %v182, %v186
    %190 = vrot.lane.b32.xlu0 %v181, 64
    %v191 = vpop.permute.xlu0 %190
    %v193 = vmul.f32 %v182, %v191
    %195 = vrot.lane.b32.xlu0 %v193, 32
    %v196 = vpop.permute.xlu0 %195
    %v198 = vadd.f32 %v188, %v196
    %v199 = vmul.f32 %v198, 0.5
    %v200 = vmul.f32 %v182, 0.5
    %v201 = vtanh.pop %v199
    %203 = vrot.lane.b32.xlu0 %v201, 64
    %v204 = vpop.permute.xlu0 %203
    %v206 = vmul.f32 %v200, %v204
    %208 = vrot.lane.b32.xlu0 %v206, 32
    %v209 = vpop.permute.xlu0 %208
    %vm211 = vcmask 254977
    %212 = vst.msk [vmem:[#allocation5] sm:$0x2] %vm211, %v209
    %v213 = vpack.c.bf16 %v206, %v206
    %v215 = vshrl.u32 %v213, 16
    %217 = vrot.lane.b32.xlu0 %v215, 32
    %v218 = vpop.permute.xlu0 %217
    %v220 = vsel %vm133, %v218, 0
    %222 = vmatprep.subr.bf16.mxu0 0
    %223 = vmatpush1.bf16.msra.mxu0 %v129
    %224 = vmatprep.subr.bf16.mxu0 0
    %225 = vmatpush1.bf16.msra.mxu0 %v130
    %226 = vmatprep.subr.bf16.mxu0 0
    %227 = vmatpush1.bf16.msra.mxu0 0
    %228 = vmatprep.subr.bf16.mxu0 0
    %229 = vmatpush1.bf16.msra.mxu0 0
    %230 = vmatprep.subr.bf16.mxu0 0
    %231 = vmatpush1.bf16.msra.mxu0 0
    %232 = vmatprep.subr.bf16.mxu0 0
    %233 = vmatpush1.bf16.msra.mxu0 0
    %234 = vmatprep.subr.bf16.mxu0 0
    %235 = vmatpush1.bf16.msra.mxu0 0
    %236 = vmatprep.subr.bf16.mxu0 0
    %237 = vmatpush1.bf16.msra.mxu0 0
    %238 = vmatprep.subr.bf16.mxu0 0
    %239 = vmatpush1.bf16.msra.mxu0 0
    %240 = vmatprep.subr.bf16.mxu0 0
    %241 = vmatpush1.bf16.msra.mxu0 0
    %242 = vmatprep.subr.bf16.mxu0 0
    %243 = vmatpush1.bf16.msra.mxu0 0
    %244 = vmatprep.subr.bf16.mxu0 0
    %245 = vmatpush1.bf16.msra.mxu0 0
    %246 = vmatprep.subr.bf16.mxu0 0
    %247 = vmatpush1.bf16.msra.mxu0 0
    %248 = vmatprep.subr.bf16.mxu0 0
    %249 = vmatpush1.bf16.msra.mxu0 0
    %250 = vmatprep.subr.bf16.mxu0 0
    %251 = vmatpush1.bf16.msra.mxu0 0
    %252 = vmatprep.subr.bf16.mxu0 0
    %253 = vmatpush1.bf16.msra.mxu0 0
    %254 = vmatprep.mubr.bf16.mxu0 0
    %255 = vmatmul.mubr.bf16.gmra.mrb[0].mxu0 %v220
    %v256 = vpop.f32.mrb[0].mxu0
    %v257 = vadd.f32 0.0, %v256
    %v258 = vpop.f32.mrb[0].mxu0
    %v259 = vpop.f32.mrb[0].mxu0
    %v260 = vpop.f32.mrb[0].mxu0
    %261 = vdwg.mxu0
    %v263 = vrot.slane %v257, 6
    %v265 = vadd.f32 %v92, %v263
    %v266 = vtanh.pop %v265
    %v267 = vadd.f32 %v266, 1.0
    %v269 = vrot.slane %v199, 7
    %v271 = vmul.f32 %v267, %v269
    %273 = vrot.lane.b32.xlu0 %v266, 64
    %v274 = vpop.permute.xlu0 %273
    %v276 = vmul.f32 %v267, %v274
    %278 = vrot.lane.b32.xlu0 %v276, 32
    %v279 = vpop.permute.xlu0 %278
    %v281 = vadd.f32 %v271, %v279
    %v282 = vmul.f32 %v281, 0.5
    %v283 = vmul.f32 %v267, 0.5
    %v284 = vtanh.pop %v282
    %286 = vrot.lane.b32.xlu0 %v284, 64
    %v287 = vpop.permute.xlu0 %286
    %v289 = vmul.f32 %v283, %v287
    %291 = vrot.lane.b32.xlu0 %v289, 32
    %v292 = vpop.permute.xlu0 %291
    %vm294 = vcmask 256002
    %295 = vst.msk [vmem:[#allocation5] sm:$0x4] %vm294, %v292
    %v296 = vpack.c.bf16 %v289, %v289
    %v298 = vrot.slane %v296, 1
    %299 = vrot.lane.b32.xlu0 %v298, 32
    %v300 = vpop.permute.xlu0 %299
    %v302 = vsel %vm133, %v300, 0
    %304 = vmatprep.subr.bf16.mxu0 0
    %305 = vmatpush1.bf16.msra.mxu0 %v129
    %306 = vmatprep.subr.bf16.mxu0 0
    %307 = vmatpush1.bf16.msra.mxu0 %v130
    %308 = vmatprep.subr.bf16.mxu0 0
    %309 = vmatpush1.bf16.msra.mxu0 0
    %310 = vmatprep.subr.bf16.mxu0 0
    %311 = vmatpush1.bf16.msra.mxu0 0
    %312 = vmatprep.subr.bf16.mxu0 0
    %313 = vmatpush1.bf16.msra.mxu0 0
    %314 = vmatprep.subr.bf16.mxu0 0
    %315 = vmatpush1.bf16.msra.mxu0 0
    %316 = vmatprep.subr.bf16.mxu0 0
    %317 = vmatpush1.bf16.msra.mxu0 0
    %318 = vmatprep.subr.bf16.mxu0 0
    %319 = vmatpush1.bf16.msra.mxu0 0
    %320 = vmatprep.subr.bf16.mxu0 0
    %321 = vmatpush1.bf16.msra.mxu0 0
    %322 = vmatprep.subr.bf16.mxu0 0
    %323 = vmatpush1.bf16.msra.mxu0 0
    %324 = vmatprep.subr.bf16.mxu0 0
    %325 = vmatpush1.bf16.msra.mxu0 0
    %326 = vmatprep.subr.bf16.mxu0 0
    %327 = vmatpush1.bf16.msra.mxu0 0
    %328 = vmatprep.subr.bf16.mxu0 0
    %329 = vmatpush1.bf16.msra.mxu0 0
    %330 = vmatprep.subr.bf16.mxu0 0
    %331 = vmatpush1.bf16.msra.mxu0 0
    %332 = vmatprep.subr.bf16.mxu0 0
    %333 = vmatpush1.bf16.msra.mxu0 0
    %334 = vmatprep.subr.bf16.mxu0 0
    %335 = vmatpush1.bf16.msra.mxu0 0
    %336 = vmatprep.mubr.bf16.mxu0 0
    %337 = vmatmul.mubr.bf16.gmra.mrb[0].mxu0 %v302
    %v338 = vpop.f32.mrb[0].mxu0
    %v339 = vadd.f32 0.0, %v338
    %v340 = vpop.f32.mrb[0].mxu0
    %v341 = vpop.f32.mrb[0].mxu0
    %v342 = vpop.f32.mrb[0].mxu0
    %343 = vdwg.mxu0
    %v345 = vrot.slane %v339, 5
    %v347 = vadd.f32 %v92, %v345
    %v348 = vtanh.pop %v347
    %v349 = vadd.f32 %v348, 1.0
    %v351 = vrot.slane %v282, 7
    %v353 = vmul.f32 %v349, %v351
    %355 = vrot.lane.b32.xlu0 %v348, 64
    %v356 = vpop.permute.xlu0 %355
    %v358 = vmul.f32 %v349, %v356
    %360 = vrot.lane.b32.xlu0 %v358, 32
    %v361 = vpop.permute.xlu0 %360
    %v363 = vadd.f32 %v353, %v361
    %v364 = vmul.f32 %v363, 0.5
    %v365 = vmul.f32 %v349, 0.5
    %v366 = vtanh.pop %v364
    %368 = vrot.lane.b32.xlu0 %v366, 64
    %v369 = vpop.permute.xlu0 %368
    %v371 = vmul.f32 %v365, %v369
    %373 = vrot.lane.b32.xlu0 %v371, 32
    %v374 = vpop.permute.xlu0 %373
    %vm376 = vcmask 257027
    %377 = vst.msk [vmem:[#allocation5] sm:$0x8] %vm376, %v374
    %v378 = vpack.c.bf16 %v371, %v371
    %v380 = vshrl.u32 %v378, 16
    %v382 = vrot.slane %v380, 1
    %383 = vrot.lane.b32.xlu0 %v382, 32
    %v384 = vpop.permute.xlu0 %383
    %v386 = vsel %vm133, %v384, 0
    %388 = vmatprep.subr.bf16.mxu0 0
    %389 = vmatpush1.bf16.msra.mxu0 %v129
    %390 = vmatprep.subr.bf16.mxu0 0
    %391 = vmatpush1.bf16.msra.mxu0 %v130
    %392 = vmatprep.subr.bf16.mxu0 0
    %393 = vmatpush1.bf16.msra.mxu0 0
    %394 = vmatprep.subr.bf16.mxu0 0
    %395 = vmatpush1.bf16.msra.mxu0 0
    %396 = vmatprep.subr.bf16.mxu0 0
    %397 = vmatpush1.bf16.msra.mxu0 0
    %398 = vmatprep.subr.bf16.mxu0 0
    %399 = vmatpush1.bf16.msra.mxu0 0
    %400 = vmatprep.subr.bf16.mxu0 0
    %401 = vmatpush1.bf16.msra.mxu0 0
    %402 = vmatprep.subr.bf16.mxu0 0
    %403 = vmatpush1.bf16.msra.mxu0 0
    %404 = vmatprep.subr.bf16.mxu0 0
    %405 = vmatpush1.bf16.msra.mxu0 0
    %406 = vmatprep.subr.bf16.mxu0 0
    %407 = vmatpush1.bf16.msra.mxu0 0
    %408 = vmatprep.subr.bf16.mxu0 0
    %409 = vmatpush1.bf16.msra.mxu0 0
    %410 = vmatprep.subr.bf16.mxu0 0
    %411 = vmatpush1.bf16.msra.mxu0 0
    %412 = vmatprep.subr.bf16.mxu0 0
    %413 = vmatpush1.bf16.msra.mxu0 0
    %414 = vmatprep.subr.bf16.mxu0 0
    %415 = vmatpush1.bf16.msra.mxu0 0
    %416 = vmatprep.subr.bf16.mxu0 0
    %417 = vmatpush1.bf16.msra.mxu0 0
    %418 = vmatprep.subr.bf16.mxu0 0
    %419 = vmatpush1.bf16.msra.mxu0 0
    %420 = vmatprep.mubr.bf16.mxu0 0
    %421 = vmatmul.mubr.bf16.gmra.mrb[0].mxu0 %v386
    %v422 = vpop.f32.mrb[0].mxu0
    %v423 = vadd.f32 0.0, %v422
    %v424 = vpop.f32.mrb[0].mxu0
    %v425 = vpop.f32.mrb[0].mxu0
    %v426 = vpop.f32.mrb[0].mxu0
    %427 = vdwg.mxu0
    %v429 = vrot.slane %v423, 4
    %v431 = vadd.f32 %v92, %v429
    %v432 = vtanh.pop %v431
    %v433 = vadd.f32 %v432, 1.0
    %v435 = vrot.slane %v364, 7
    %v437 = vmul.f32 %v433, %v435
    %439 = vrot.lane.b32.xlu0 %v432, 64
    %v440 = vpop.permute.xlu0 %439
    %v442 = vmul.f32 %v433, %v440
    %444 = vrot.lane.b32.xlu0 %v442, 32
    %v445 = vpop.permute.xlu0 %444
    %v447 = vadd.f32 %v437, %v445
    %v448 = vmul.f32 %v447, 0.5
    %v449 = vmul.f32 %v433, 0.5
    %v450 = vtanh.pop %v448
    %452 = vrot.lane.b32.xlu0 %v450, 64
    %v453 = vpop.permute.xlu0 %452
    %v455 = vmul.f32 %v449, %v453
    %457 = vrot.lane.b32.xlu0 %v455, 32
    %v458 = vpop.permute.xlu0 %457
    %vm460 = vcmask 258052
    %461 = vst.msk [vmem:[#allocation5] sm:$0x10] %vm460, %v458
    %v462 = vpack.c.bf16 %v455, %v455
    %v464 = vrot.slane %v462, 2
    %465 = vrot.lane.b32.xlu0 %v464, 32
    %v466 = vpop.permute.xlu0 %465
    %v468 = vsel %vm133, %v466, 0
    %470 = vmatprep.subr.bf16.mxu0 0
    %471 = vmatpush1.bf16.msra.mxu0 %v129
    %472 = vmatprep.subr.bf16.mxu0 0
    %473 = vmatpush1.bf16.msra.mxu0 %v130
    %474 = vmatprep.subr.bf16.mxu0 0
    %475 = vmatpush1.bf16.msra.mxu0 0
    %476 = vmatprep.subr.bf16.mxu0 0
    %477 = vmatpush1.bf16.msra.mxu0 0
    %478 = vmatprep.subr.bf16.mxu0 0
    %479 = vmatpush1.bf16.msra.mxu0 0
    %480 = vmatprep.subr.bf16.mxu0 0
    %481 = vmatpush1.bf16.msra.mxu0 0
    %482 = vmatprep.subr.bf16.mxu0 0
    %483 = vmatpush1.bf16.msra.mxu0 0
    %484 = vmatprep.subr.bf16.mxu0 0
    %485 = vmatpush1.bf16.msra.mxu0 0
    %486 = vmatprep.subr.bf16.mxu0 0
    %487 = vmatpush1.bf16.msra.mxu0 0
    %488 = vmatprep.subr.bf16.mxu0 0
    %489 = vmatpush1.bf16.msra.mxu0 0
    %490 = vmatprep.subr.bf16.mxu0 0
    %491 = vmatpush1.bf16.msra.mxu0 0
    %492 = vmatprep.subr.bf16.mxu0 0
    %493 = vmatpush1.bf16.msra.mxu0 0
    %494 = vmatprep.subr.bf16.mxu0 0
    %495 = vmatpush1.bf16.msra.mxu0 0
    %496 = vmatprep.subr.bf16.mxu0 0
    %497 = vmatpush1.bf16.msra.mxu0 0
    %498 = vmatprep.subr.bf16.mxu0 0
    %499 = vmatpush1.bf16.msra.mxu0 0
    %500 = vmatprep.subr.bf16.mxu0 0
    %501 = vmatpush1.bf16.msra.mxu0 0
    %502 = vmatprep.mubr.bf16.mxu0 0
    %503 = vmatmul.mubr.bf16.gmra.mrb[0].mxu0 %v468
    %v504 = vpop.f32.mrb[0].mxu0
    %v505 = vadd.f32 0.0, %v504
    %v506 = vpop.f32.mrb[0].mxu0
    %v507 = vpop.f32.mrb[0].mxu0
    %v508 = vpop.f32.mrb[0].mxu0
    %509 = vdwg.mxu0
    %v511 = vrot.slane %v505, 3
    %v513 = vadd.f32 %v92, %v511
    %v514 = vtanh.pop %v513
    %v515 = vadd.f32 %v514, 1.0
    %v517 = vrot.slane %v448, 7
    %v519 = vmul.f32 %v515, %v517
    %521 = vrot.lane.b32.xlu0 %v514, 64
    %v522 = vpop.permute.xlu0 %521
    %v524 = vmul.f32 %v515, %v522
    %526 = vrot.lane.b32.xlu0 %v524, 32
    %v527 = vpop.permute.xlu0 %526
    %v529 = vadd.f32 %v519, %v527
    %v530 = vmul.f32 %v529, 0.5
    %v531 = vmul.f32 %v515, 0.5
    %v532 = vtanh.pop %v530
    %534 = vrot.lane.b32.xlu0 %v532, 64
    %v535 = vpop.permute.xlu0 %534
    %v537 = vmul.f32 %v531, %v535
    %539 = vrot.lane.b32.xlu0 %v537, 32
    %v540 = vpop.permute.xlu0 %539
    %vm542 = vcmask 259077
    %543 = vst.msk [vmem:[#allocation5] sm:$0x20] %vm542, %v540
    %v544 = vpack.c.bf16 %v537, %v537
    %v546 = vshrl.u32 %v544, 16
    %v548 = vrot.slane %v546, 2
    %549 = vrot.lane.b32.xlu0 %v548, 32
    %v550 = vpop.permute.xlu0 %549
    %v552 = vsel %vm133, %v550, 0
    %554 = vmatprep.subr.bf16.mxu0 0
    %555 = vmatpush1.bf16.msra.mxu0 %v129
    %556 = vmatprep.subr.bf16.mxu0 0
    %557 = vmatpush1.bf16.msra.mxu0 %v130
    %558 = vmatprep.subr.bf16.mxu0 0
    %559 = vmatpush1.bf16.msra.mxu0 0
    %560 = vmatprep.subr.bf16.mxu0 0
    %561 = vmatpush1.bf16.msra.mxu0 0
    %562 = vmatprep.subr.bf16.mxu0 0
    %563 = vmatpush1.bf16.msra.mxu0 0
    %564 = vmatprep.subr.bf16.mxu0 0
    %565 = vmatpush1.bf16.msra.mxu0 0
    %566 = vmatprep.subr.bf16.mxu0 0
    %567 = vmatpush1.bf16.msra.mxu0 0
    %568 = vmatprep.subr.bf16.mxu0 0
    %569 = vmatpush1.bf16.msra.mxu0 0
    %570 = vmatprep.subr.bf16.mxu0 0
    %571 = vmatpush1.bf16.msra.mxu0 0
    %572 = vmatprep.subr.bf16.mxu0 0
    %573 = vmatpush1.bf16.msra.mxu0 0
    %574 = vmatprep.subr.bf16.mxu0 0
    %575 = vmatpush1.bf16.msra.mxu0 0
    %576 = vmatprep.subr.bf16.mxu0 0
    %577 = vmatpush1.bf16.msra.mxu0 0
    %578 = vmatprep.subr.bf16.mxu0 0
    %579 = vmatpush1.bf16.msra.mxu0 0
    %580 = vmatprep.subr.bf16.mxu0 0
    %581 = vmatpush1.bf16.msra.mxu0 0
    %582 = vmatprep.subr.bf16.mxu0 0
    %583 = vmatpush1.bf16.msra.mxu0 0
    %584 = vmatprep.subr.bf16.mxu0 0
    %585 = vmatpush1.bf16.msra.mxu0 0
    %586 = vmatprep.mubr.bf16.mxu0 0
    %587 = vmatmul.mubr.bf16.gmra.mrb[0].mxu0 %v552
    %v588 = vpop.f32.mrb[0].mxu0
    %v589 = vadd.f32 0.0, %v588
    %v590 = vpop.f32.mrb[0].mxu0
    %v591 = vpop.f32.mrb[0].mxu0
    %v592 = vpop.f32.mrb[0].mxu0
    %593 = vdwg.mxu0
    %v595 = vrot.slane %v589, 2
    %v597 = vadd.f32 %v92, %v595
    %v598 = vtanh.pop %v597
    %v599 = vadd.f32 %v598, 1.0
    %v601 = vrot.slane %v530, 7
    %v603 = vmul.f32 %v599, %v601
    %605 = vrot.lane.b32.xlu0 %v598, 64
    %v606 = vpop.permute.xlu0 %605
    %v608 = vmul.f32 %v599, %v606
    %610 = vrot.lane.b32.xlu0 %v608, 32
    %v611 = vpop.permute.xlu0 %610
    %v613 = vadd.f32 %v603, %v611
    %v614 = vmul.f32 %v613, 0.5
    %v615 = vmul.f32 %v599, 0.5
    %v616 = vtanh.pop %v614
    %618 = vrot.lane.b32.xlu0 %v616, 64
    %v619 = vpop.permute.xlu0 %618
    %v621 = vmul.f32 %v615, %v619
    %623 = vrot.lane.b32.xlu0 %v621, 32
    %v624 = vpop.permute.xlu0 %623
    %vm626 = vcmask 260102
    %627 = vst.msk [vmem:[#allocation5] sm:$0x40] %vm626, %v624
    %v628 = vpack.c.bf16 %v621, %v621
    %v630 = vrot.slane %v628, 3
    %631 = vrot.lane.b32.xlu0 %v630, 32
    %v632 = vpop.permute.xlu0 %631
    %v634 = vsel %vm133, %v632, 0
    %636 = vmatprep.subr.bf16.mxu0 0
    %637 = vmatpush1.bf16.msra.mxu0 %v129
    %638 = vmatprep.subr.bf16.mxu0 0
    %639 = vmatpush1.bf16.msra.mxu0 %v130
    %640 = vmatprep.subr.bf16.mxu0 0
    %641 = vmatpush1.bf16.msra.mxu0 0
    %642 = vmatprep.subr.bf16.mxu0 0
    %643 = vmatpush1.bf16.msra.mxu0 0
    %644 = vmatprep.subr.bf16.mxu0 0
    %645 = vmatpush1.bf16.msra.mxu0 0
    %646 = vmatprep.subr.bf16.mxu0 0
    %647 = vmatpush1.bf16.msra.mxu0 0
    %648 = vmatprep.subr.bf16.mxu0 0
    %649 = vmatpush1.bf16.msra.mxu0 0
    %650 = vmatprep.subr.bf16.mxu0 0
    %651 = vmatpush1.bf16.msra.mxu0 0
    %652 = vmatprep.subr.bf16.mxu0 0
    %653 = vmatpush1.bf16.msra.mxu0 0
    %654 = vmatprep.subr.bf16.mxu0 0
    %655 = vmatpush1.bf16.msra.mxu0 0
    %656 = vmatprep.subr.bf16.mxu0 0
    %657 = vmatpush1.bf16.msra.mxu0 0
    %658 = vmatprep.subr.bf16.mxu0 0
    %659 = vmatpush1.bf16.msra.mxu0 0
    %660 = vmatprep.subr.bf16.mxu0 0
    %661 = vmatpush1.bf16.msra.mxu0 0
    %662 = vmatprep.subr.bf16.mxu0 0
    %663 = vmatpush1.bf16.msra.mxu0 0
    %664 = vmatprep.subr.bf16.mxu0 0
    %665 = vmatpush1.bf16.msra.mxu0 0
    %666 = vmatprep.subr.bf16.mxu0 0
    %667 = vmatpush1.bf16.msra.mxu0 0
    %668 = vmatprep.mubr.bf16.mxu0 0
    %669 = vmatmul.mubr.bf16.gmra.mrb[0].mxu0 %v634
    %v670 = vpop.f32.mrb[0].mxu0
    %v671 = vadd.f32 0.0, %v670
    %v672 = vpop.f32.mrb[0].mxu0
    %v673 = vpop.f32.mrb[0].mxu0
    %v674 = vpop.f32.mrb[0].mxu0
    %675 = vdwg.mxu0
    %v677 = vrot.slane %v671, 1
    %v679 = vadd.f32 %v92, %v677
    %v680 = vtanh.pop %v679
    %v681 = vadd.f32 %v680, 1.0
    %v683 = vrot.slane %v614, 7
    %v685 = vmul.f32 %v681, %v683
    %687 = vrot.lane.b32.xlu0 %v680, 64
    %v688 = vpop.permute.xlu0 %687
    %v690 = vmul.f32 %v681, %v688
    %692 = vrot.lane.b32.xlu0 %v690, 32
    %v693 = vpop.permute.xlu0 %692
    %v695 = vadd.f32 %v685, %v693
    %v696 = vmul.f32 %v695, 0.5
    %v697 = vmul.f32 %v681, 0.5
    %v698 = vtanh.pop %v696
    %700 = vrot.lane.b32.xlu0 %v698, 64
    %v701 = vpop.permute.xlu0 %700
    %v703 = vmul.f32 %v697, %v701
    %705 = vrot.lane.b32.xlu0 %v703, 32
    %v706 = vpop.permute.xlu0 %705
    %vm708 = vcmask 261127
    %709 = vst.msk [vmem:[#allocation5] sm:$0x80] %vm708, %v706
    // Predicated region
    $region22: #{rnn_embed_forward.1} parent=1 // pred_check
      _
    $region23: #{rnn_embed_forward.1} parent=1 // pred_check_branch
      %711 = sbr.rel (0) target = $region25
    $region24: #{rnn_embed_forward.1} parent=1 // pred_region
      %s713 = ssub.s32 128, 128
      %714 = vsyncadd [#allocation4], %s713
      %s716 = sshll.u32 [#allocation5], 4
      %s717 = int_to_ptr.vmem [resolvable:$true] %s716
      %719 = dma.vmem_to_hbm [thread:$0]  %s717, 128, %s4, [#allocation4]
    $region25: #{rnn_embed_forward.1} parent=1 // pred_fallthru
      _
    // Predicated region
    $region26: #{rnn_embed_forward.1} parent=1 // pred_check
      _
    $region27: #{rnn_embed_forward.1} parent=1 // pred_check_branch
      %721 = sbr.rel (0) target = $region29
    $region28: #{rnn_embed_forward.1} parent=1 // pred_region
      %722 = dma.done [#allocation4], 128
    $region29: #{rnn_embed_forward.1} parent=1 // pred_fallthru
      _
    %723 = vsyncpa [#allocation3], 1
    %724 = vsyncpa [#allocation4], 1

</llo_original>
